<compile_context>
chip_gen: v7x
topology: tpu7x:2x2x1
jax: 0.10.0
libtpu: 0.0.40
codegen_flags: <defaults>
</compile_context>

<pallas_src>
import functools

import jax
import jax.numpy as jnp
from jax import lax
from jax.experimental import pallas as pl
from jax.experimental.pallas import tpu as pltpu

ALPHA = 0.25
GAMMA = 2.0          # compile-time 2.0 -> explicit square inside the kernel
POS_WEIGHT = 4.0     # deterministic init: torch.tensor([4.0]) in the module

_LANES = 128
_SUBLANES = 8


def _round_up(a: int, b: int) -> int:
    return -(-a // b) * b


def _focal_elementwise(x, t):
    """Per-element focal loss in f32 (stable BCE-with-logits, matches PyTorch)."""
    x = x.astype(jnp.float32)
    t = t.astype(jnp.float32)
    # bce = (1 - t) * x + (1 + (pw - 1) * t) * softplus(-x)
    # softplus(-x) = log1p(exp(-|x|)) + max(-x, 0)
    softplus_neg_x = jnp.log1p(jnp.exp(-jnp.abs(x))) + jnp.maximum(-x, 0.0)
    bce = (1.0 - t) * x + (1.0 + (POS_WEIGHT - 1.0) * t) * softplus_neg_x
    pt = jnp.exp(-bce)
    one_m_pt = 1.0 - pt
    # gamma == 2 -> explicit square (avoids pow -> exp+log on the lone EUP slot)
    return ALPHA * one_m_pt * one_m_pt * bce


def _focal_loss_kernel(x_ref, t_ref, out_ref, *, tile_n, valid_rows, needs_mask):
    i = pl.program_id(0)

    focal = _focal_elementwise(x_ref[...], t_ref[...])

    def _reduce_and_store(mask_rows: bool):
        f = focal
        if mask_rows:
            # Only the final (partial) block contains garbage rows from the
            # boundary DMA; zero them before folding.  i * tile_n is int32,
            # fine up to ~2e9 rows (~2.7e11 elements).
            row = lax.broadcasted_iota(jnp.int32, (tile_n, _LANES), 0)
            f = jnp.where(i * tile_n + row < valid_rows, f, 0.0)
        # Layout-preserving (tile_n,128)->(tile_n//8,8,128) fold: pure VPU vreg
        # adds, no XLU cross-lane reduce; lane-dense (8,128) unmasked store.
        out_ref[0] = jnp.sum(
            f.reshape(tile_n // _SUBLANES, _SUBLANES, _LANES), axis=0
        )

    if needs_mask:
        last = pl.num_programs(0) - 1

        @pl.when(i == last)
        def _():
            _reduce_and_store(True)

        @pl.when(i != last)
        def _():
            _reduce_and_store(False)
    else:
        _reduce_and_store(False)


def focal_loss(inputs, targets, *, tile_n=8192):
    """Pallas implementation of FocalLoss.forward. Returns a scalar f32 mean.

    Accepts any shape; f32 or bf16 logits and f32 / bf16 / int targets are
    fine (the kernel upcasts per-tile, so narrow dtypes halve HBM traffic).
    """
    assert inputs.shape == targets.shape
    total = int(inputs.size)
    if total == 0:
        return jnp.float32(jnp.nan)

    x_flat = inputs.reshape(-1)
    t_flat = targets.reshape(-1)

    rows = total // _LANES            # full 128-wide rows handled by the kernel
    tail = total - rows * _LANES      # < 128 leftover elements handled in JAX

    tail_sum = jnp.float32(0.0)
    if tail:
        tail_sum = jnp.sum(
            _focal_elementwise(x_flat[rows * _LANES:], t_flat[rows * _LANES:])
        )

    if rows == 0:
        # Tiny input (< 128 elements): nothing for the kernel to do.
        return tail_sum / jnp.float32(total)

    # Lane-dense (rows, 128) view of the largest 128-aligned prefix.  When the
    # input is already a multiple of 128 this is a free full-extent slice +
    # bitcast reshape (no jnp.pad / full-array copy).
    x2 = x_flat[: rows * _LANES].reshape(rows, _LANES)
    t2 = t_flat[: rows * _LANES].reshape(rows, _LANES)

    # ---- Tile-size selection ------------------------------------------------
    # Big tiles amortize the ~0.35us/step overhead.  Pipelined footprint is
    # 2 inputs x 2 buffers x tile; at the 8192-row f32 default that is 16 MiB,
    # comfortably inside v7x's 64 MiB VMEM (and trivially inside v5e/v6e).
    tile_n = max(_SUBLANES, _round_up(int(tile_n), _SUBLANES))
    tile_n = min(tile_n, _round_up(rows, _SUBLANES))
    if rows > _SUBLANES:
        # Keep >= 2 grid blocks so dimension_semantics=("parallel",) can
        # megacore-shard across v7x's two TensorCores.
        tile_n = min(tile_n, _round_up(-(-rows // 2), _SUBLANES))
    tile_n = max(tile_n, _SUBLANES)

    num_blocks = -(-rows // tile_n)
    needs_mask = (rows % tile_n) != 0

    tile_bytes = tile_n * _LANES * (x2.dtype.itemsize + t2.dtype.itemsize)
    # 2x headroom over the double-buffered footprint, capped for v7x (64 MiB).
    vmem_limit = int(min(max(4 * tile_bytes, 32 * 1024 * 1024), 48 * 1024 * 1024))

    kernel = functools.partial(
        _focal_loss_kernel, tile_n=tile_n, valid_rows=rows, needs_mask=needs_mask
    )

    partials = pl.pallas_call(
        kernel,
        out_shape=jax.ShapeDtypeStruct((num_blocks, _SUBLANES, _LANES), jnp.float32),
        grid_spec=pltpu.PrefetchScalarGridSpec(
            num_scalar_prefetch=0,
            grid=(num_blocks,),
            in_specs=[
                pl.BlockSpec((tile_n, _LANES), lambda i: (i, 0)),
                pl.BlockSpec((tile_n, _LANES), lambda i: (i, 0)),
            ],
            out_specs=pl.BlockSpec((1, _SUBLANES, _LANES), lambda i: (i, 0, 0)),
        ),
        compiler_params=pltpu.CompilerParams(
            dimension_semantics=("parallel",),
            vmem_limit_bytes=vmem_limit,
        ),
    )(x2, t2)

    # Tiny cross-block reduction + exact mean in plain JAX.
    return (jnp.sum(partials) + tail_sum) / jnp.float32(total)


def focal_loss_ref(inputs, targets):
    """Pure-JAX reference matching the PyTorch module."""
    return jnp.mean(_focal_elementwise(inputs, targets))


if __name__ == "__main__":
    key = jax.random.PRNGKey(0)
    k1, k2, k3, k4, k5, k6 = jax.random.split(key, 6)

    # 1) Lane-aligned case: (16, 128) f32 logits / binary f32 targets.
    #    rows=16 -> 2 blocks of 8 rows, no masking, no tail.
    x1 = jax.random.normal(k1, (16, 128), dtype=jnp.float32) * 2.0
    t1 = (jax.random.uniform(k2, (16, 128)) < 0.3).astype(jnp.float32)
    out1 = jax.block_until_ready(focal_loss(x1, t1))
    ref1 = focal_loss_ref(x1, t1)
    assert jnp.allclose(out1, ref1, rtol=1e-5, atol=1e-6), (out1, ref1)

    # 2) Ragged case: (33, 21) = 693 elements -> 5 full rows in the kernel
    #    (single partial block, mask path) + 53-element tail in plain JAX.
    x2 = jax.random.normal(k3, (33, 21), dtype=jnp.float32) * 2.0
    t2 = (jax.random.uniform(k4, (33, 21)) < 0.3).astype(jnp.float32)
    out2 = jax.block_until_ready(focal_loss(x2, t2))
    ref2 = focal_loss_ref(x2, t2)
    assert jnp.allclose(out2, ref2, rtol=1e-5, atol=1e-6), (out2, ref2)

    # 3) Multi-block with a partial last block: (40, 128) -> tile_n=24,
    #    2 blocks, last block masks 8 garbage rows (exercises pl.when gating).
    x3 = jax.random.normal(k5, (40, 128), dtype=jnp.float32) * 2.0
    t3 = (jax.random.uniform(k6, (40, 128)) < 0.3).astype(jnp.float32)
    out3 = jax.block_until_ready(focal_loss(x3, t3))
    ref3 = focal_loss_ref(x3, t3)
    assert jnp.allclose(out3, ref3, rtol=1e-5, atol=1e-6), (out3, ref3)

    # 4) Narrow-dtype targets (bf16 0/1 is exact): result must match the f32 ref.
    out4 = jax.block_until_ready(focal_loss(x1, t1.astype(jnp.bfloat16)))
    assert jnp.allclose(out4, ref1, rtol=1e-5, atol=1e-6), (out4, ref1)

    print("KERNEL_OK")
</pallas_src>

<mosaic_0001>
module attributes {stable_mosaic.version = 11 : i64} {
  func.func @_focal_loss_kernel(%arg0: i32, %arg1: memref<8x128xf32, #tpu.memory_space<vmem>>, %arg2: memref<8x128xf32, #tpu.memory_space<vmem>>, %arg3: memref<1x8x128xf32, #tpu.memory_space<vmem>>) attributes {dimension_semantics = [#tpu.dimension_semantics<parallel>], iteration_bounds = array<i64: 2>, scalar_prefetch = 0 : i64, scratch_operands = 0 : i64, tpu.core_type = #tpu.core_type<tc>, window_params = [{transform_indices = @transform_0, window_bounds = array<i64: 8, 128>}, {transform_indices = @transform_1, window_bounds = array<i64: 8, 128>}, {transform_indices = @transform_2, window_bounds = array<i64: 1, 8, 128>}]} {
    %c0 = arith.constant 0 : index
    %c0_0 = arith.constant 0 : index
    %0 = vector.load %arg1[%c0, %c0_0] : memref<8x128xf32, #tpu.memory_space<vmem>>, vector<8x128xf32>
    %c0_1 = arith.constant 0 : index
    %c0_2 = arith.constant 0 : index
    %1 = vector.load %arg2[%c0_1, %c0_2] : memref<8x128xf32, #tpu.memory_space<vmem>>, vector<8x128xf32>
    %2 = math.absf %0 : vector<8x128xf32>
    %cst = arith.constant 0.000000e+00 : f32
    %3 = vector.broadcast %cst : f32 to vector<8x128xf32>
    %4 = arith.subf %3, %2 : vector<8x128xf32>
    %5 = math.exp %4 : vector<8x128xf32>
    %6 = math.log1p %5 : vector<8x128xf32>
    %cst_3 = arith.constant 0.000000e+00 : f32
    %7 = vector.broadcast %cst_3 : f32 to vector<8x128xf32>
    %8 = arith.subf %7, %0 : vector<8x128xf32>
    %cst_4 = arith.constant 0.000000e+00 : f32
    %9 = vector.broadcast %cst_4 : f32 to vector<8x128xf32>
    %10 = arith.maximumf %8, %9 : vector<8x128xf32>
    %11 = arith.addf %6, %10 : vector<8x128xf32>
    %cst_5 = arith.constant 1.000000e+00 : f32
    %12 = vector.broadcast %cst_5 : f32 to vector<8x128xf32>
    %13 = arith.subf %12, %1 : vector<8x128xf32>
    %14 = arith.mulf %13, %0 : vector<8x128xf32>
    %cst_6 = arith.constant 3.000000e+00 : f32
    %15 = vector.broadcast %cst_6 : f32 to vector<8x128xf32>
    %16 = arith.mulf %15, %1 : vector<8x128xf32>
    %cst_7 = arith.constant 1.000000e+00 : f32
    %17 = vector.broadcast %cst_7 : f32 to vector<8x128xf32>
    %18 = arith.addf %17, %16 : vector<8x128xf32>
    %19 = arith.mulf %18, %11 : vector<8x128xf32>
    %20 = arith.addf %14, %19 : vector<8x128xf32>
    %cst_8 = arith.constant 0.000000e+00 : f32
    %21 = vector.broadcast %cst_8 : f32 to vector<8x128xf32>
    %22 = arith.subf %21, %20 : vector<8x128xf32>
    %23 = math.exp %22 : vector<8x128xf32>
    %cst_9 = arith.constant 1.000000e+00 : f32
    %24 = vector.broadcast %cst_9 : f32 to vector<8x128xf32>
    %25 = arith.subf %24, %23 : vector<8x128xf32>
    %cst_10 = arith.constant 2.500000e-01 : f32
    %26 = vector.broadcast %cst_10 : f32 to vector<8x128xf32>
    %27 = arith.mulf %26, %25 : vector<8x128xf32>
    %28 = arith.mulf %27, %25 : vector<8x128xf32>
    %29 = arith.mulf %28, %20 : vector<8x128xf32>
    %30 = vector.shape_cast %29 : vector<8x128xf32> to vector<1x8x128xf32>
    %cst_11 = arith.constant dense<0.000000e+00> : vector<8x128xf32>
    %31 = vector.multi_reduction <add>, %30, %cst_11 [0] : vector<1x8x128xf32> to vector<8x128xf32>
    %c0_12 = arith.constant 0 : index
    %c0_13 = arith.constant 0 : index
    %c0_14 = arith.constant 0 : index
    %32 = vector.load %arg3[%c0_12, %c0_13, %c0_14] : memref<1x8x128xf32, #tpu.memory_space<vmem>>, vector<1x8x128xf32>
    %33 = vector.shape_cast %32 : vector<1x8x128xf32> to vector<8x128xf32>
    %34 = vector.shape_cast %31 : vector<8x128xf32> to vector<1x8x128xf32>
    tpu.vector_store %arg3[%c0_12, %c0_13, %c0_14], %34 {strides = array<i32>} : memref<1x8x128xf32, #tpu.memory_space<vmem>>, vector<1x8x128xf32>,
    return
  }
  func.func @transform_0(%arg0: i32) -> (i32, i32) {
    %c0_i32 = arith.constant 0 : i32
    %c0_i32_0 = arith.constant 0 : i32
    return %arg0, %c0_i32 : i32, i32
  }
  func.func @transform_1(%arg0: i32) -> (i32, i32) {
    %c0_i32 = arith.constant 0 : i32
    %c0_i32_0 = arith.constant 0 : i32
    return %arg0, %c0_i32 : i32, i32
  }
  func.func @transform_2(%arg0: i32) -> (i32, i32, i32) {
    %c0_i32 = arith.constant 0 : i32
    %c0_i32_0 = arith.constant 0 : i32
    %c0_i32_1 = arith.constant 0 : i32
    return %arg0, %c0_i32, %c0_i32_0 : i32, i32, i32
  }
}

</mosaic_0001>

<llo_original>
// kernel: tpu_custom_call.1
$region0: #{tpu_custom_call.1}
  #allocation0 [shape = 'u32[]', space=smem, size = 0x4, offset = 0x4, fixed_abs, tag = 'smem constant byte address 0x4 - core index']
  #allocation1 [shape = 'u32[144,128]{1,0:T(1,128)}', space=vmem, size = 0x12000, scoped, tag = 'internal scratch']
  %s0 = inlined_call_operand.hbm [shape: f32[16,128], index: 0, kind: input, shape index: {}]
  %s1 = inlined_call_operand.hbm [shape: f32[16,128], index: 1, kind: input, shape index: {}]
  %s2 = inlined_call_operand.hbm [shape: f32[2,8,128], index: 2, kind: output, shape index: {}]
  %s3 = sld [smem:[#allocation0]]
  $region49: #{tpu_custom_call.1} parent=0
    _
  %s5 = ssub.s32 1, %s3
  %s6 = scalar_select 0, %s5, %s3
  $region1: #{tpu_custom_call.1} parent=0
    #allocation2 [shape = 'u8[8192]{0}', space=vmem, size = 0x2000, scoped, tag = 'input window, operand 0']
    #allocation3 [shape = 's32[2]{0}', space=sflag, size = 0x8, scoped, tag = 'scoped memory for tpu_custom_call.1']
    #allocation4 [shape = 's32[2]{0}', space=sflag, size = 0x8, scoped, tag = 'scoped memory for tpu_custom_call.1']
    #allocation5 [shape = 'u8[8192]{0}', space=vmem, size = 0x2000, scoped, tag = 'input window, operand 1']
    #allocation6 [shape = 's32[2]{0}', space=sflag, size = 0x8, scoped, tag = 'scoped memory for tpu_custom_call.1']
    #allocation7 [shape = 'u8[8192]{0}', space=vmem, size = 0x2000, scoped, tag = 'output window, operand 0']
    %7 = vsyncpa [#allocation3], 0
    %s8 = scalar_lea.sflag [#allocation3], 1
    %9 = vsyncpa %s8, 0
    %10 = vsyncpa [#allocation6], 0
    %s11 = scalar_lea.sflag [#allocation6], 1
    %12 = vsyncpa %s11, 0
    %13 = vsyncpa [#allocation4], 0
    %s14 = scalar_lea.sflag [#allocation4], 1
    %15 = vsyncpa %s14, 0
    loop: start=0, step=1, limit=4
    $region2: #{tpu_custom_call.1} parent=1 // loop_pre_header
      _
    $region3: #{tpu_custom_call.1} parent=1 // loop_header
      %s17 = sphi 0, %s21
      %p18 = scmp.ge.s32.totalorder %s17, 4
      %s27 = sphi 0, %s29
      %s30 = sphi 0, %s27
      %s31 = sphi 0, %s30
      %s47 = sphi 0, %s31
      %s53 = sphi 0, %s55
      %s56 = sphi 0, %s53
      %s57 = sphi 0, %s56
      %s73 = sphi 0, %s57
      %s79 = sphi 0, %s81
      %s82 = sphi 0, %s79
      %s83 = sphi 0, %s82
      %s99 = sphi 0, %s83
    $region4: #{tpu_custom_call.1} parent=1 // loop_header_branch
      %20 = sbr.rel (%p18) target = $region8
    $region5: #{tpu_custom_call.1} parent=1 // loop_body
      %s22 = ssub.s32 %s17, 1
      %s23 = ssub.s32 %s17, 2
      %s24 = sadd.s32 %s17, 1
      %s25 = ssub.s32 %s17, %s24
      %p26 = scmp.eq.s32.totalorder %s25, 0
      %s28 = sadd.s32 %s27, 1
      %s29 = scalar_select %p26, %s27, %s28
      %p32 = pneg %p26
      %p33 = scmp.eq.s32.totalorder %s17, 1
      %p34 = por %p32, %p33
      %p35 = scmp.ne.s32.totalorder %s27, %s30
      %p36 = scmp.eq.s32.totalorder %s17, 0
      %p37 = por %p35, %p36
      %p38 = scmp.ne.s32.totalorder %s27, %s30
      %p39 = scmp.eq.s32.totalorder %s22, 1
      %p40 = por %p38, %p39
      %p41 = scmp.ne.s32.totalorder %s30, %s31
      %p42 = scmp.eq.s32.totalorder %s22, 0
      %p43 = por %p41, %p42
      %p44 = scmp.ne.s32.totalorder %s30, %s31
      %p45 = scmp.eq.s32.totalorder %s23, 1
      %p46 = por %p44, %p45
      %p48 = scmp.ne.s32.totalorder %s31, %s47
      %p49 = scmp.eq.s32.totalorder %s23, 0
      %p50 = por %p48, %p49
      %s51 = ssub.s32 %s17, %s24
      %p52 = scmp.eq.s32.totalorder %s51, 0
      %s54 = sadd.s32 %s53, 1
      %s55 = scalar_select %p52, %s53, %s54
      %p58 = pneg %p52
      %p59 = scmp.eq.s32.totalorder %s17, 1
      %p60 = por %p58, %p59
      %p61 = scmp.ne.s32.totalorder %s53, %s56
      %p62 = scmp.eq.s32.totalorder %s17, 0
      %p63 = por %p61, %p62
      %p64 = scmp.ne.s32.totalorder %s53, %s56
      %p65 = scmp.eq.s32.totalorder %s22, 1
      %p66 = por %p64, %p65
      %p67 = scmp.ne.s32.totalorder %s56, %s57
      %p68 = scmp.eq.s32.totalorder %s22, 0
      %p69 = por %p67, %p68
      %p70 = scmp.ne.s32.totalorder %s56, %s57
      %p71 = scmp.eq.s32.totalorder %s23, 1
      %p72 = por %p70, %p71
      %p74 = scmp.ne.s32.totalorder %s57, %s73
      %p75 = scmp.eq.s32.totalorder %s23, 0
      %p76 = por %p74, %p75
      %s77 = ssub.s32 %s17, %s24
      %p78 = scmp.eq.s32.totalorder %s77, 0
      %s80 = sadd.s32 %s79, 1
      %s81 = scalar_select %p78, %s79, %s80
      %p84 = pneg %p78
      %p85 = scmp.eq.s32.totalorder %s17, 1
      %p86 = por %p84, %p85
      %p87 = scmp.ne.s32.totalorder %s79, %s82
      %p88 = scmp.eq.s32.totalorder %s17, 0
      %p89 = por %p87, %p88
      %p90 = scmp.ne.s32.totalorder %s79, %s82
      %p91 = scmp.eq.s32.totalorder %s22, 1
      %p92 = por %p90, %p91
      %p93 = scmp.ne.s32.totalorder %s82, %s83
      %p94 = scmp.eq.s32.totalorder %s22, 0
      %p95 = por %p93, %p94
      %p96 = scmp.ne.s32.totalorder %s82, %s83
      %p97 = scmp.eq.s32.totalorder %s23, 1
      %p98 = por %p96, %p97
      %p100 = scmp.ne.s32.totalorder %s83, %s99
      %p101 = scmp.eq.s32.totalorder %s23, 0
      %p102 = por %p100, %p101
      %p103 = scmp.le.s32.totalorder 1, %s17
      %p104 = scmp.lt.s32.totalorder %s17, 3
      %p105 = pnand %p103, %p104
      %p106 = pneg %p105
      // Predicated region
      $region9: #{tpu_custom_call.1} parent=5 // pred_check
        _
      $region10: #{tpu_custom_call.1} parent=5 // pred_check_branch
        %108 = sbr.rel (%p105) target = $region12
      $region11: #{tpu_custom_call.1} parent=5 // pred_region
        %s109 = ssub.s32 %s17, 1
      $region12: #{tpu_custom_call.1} parent=5 // pred_fallthru
        _
      %p110 = scmp.lt.s32.totalorder %s17, 2
      // Predicated region
      $region13: #{tpu_custom_call.1} parent=5 // pred_check
        %p111 = pneg %p110
      $region14: #{tpu_custom_call.1} parent=5 // pred_check_branch
        %113 = sbr.rel (%p111) target = $region16
      $region15: #{tpu_custom_call.1} parent=5 // pred_region
        // Predicated region
        $region17: #{tpu_custom_call.1} parent=15 // pred_check
          %p114 = pneg %p37
        $region18: #{tpu_custom_call.1} parent=15 // pred_check_branch
          %116 = sbr.rel (%p114) target = $region20
        $region19: #{tpu_custom_call.1} parent=15 // pred_region
          %s117 = sand.u32 %s27, 1
          %s118 = scalar_lea.sflag [#allocation3], %s117
          %s119 = sand.u32 %s27, 1
          %s120 = smul.addr %s119, 8
          %s121 = scalar_lea.vmem [#allocation2], %s120
          %s123 = ssub.s32 128, 128
          %124 = vsyncadd %s118, %s123
          %s125 = smul.addr %s17, 128
          %s126 = scalar_lea.hbm %s0, %s125
          %s128 = sshll.u32 %s121, 4
          %s129 = int_to_ptr.vmem [resolvable:$true] %s128
          %131 = dma.hbm_to_vmem [thread:$0]  %s126, 128, %s129, %s118
        $region20: #{tpu_custom_call.1} parent=15 // pred_fallthru
          _
        // Predicated region
        $region21: #{tpu_custom_call.1} parent=15 // pred_check
          %p132 = pneg %p63
        $region22: #{tpu_custom_call.1} parent=15 // pred_check_branch
          %134 = sbr.rel (%p132) target = $region24
        $region23: #{tpu_custom_call.1} parent=15 // pred_region
          %s135 = sand.u32 %s53, 1
          %s136 = scalar_lea.sflag [#allocation6], %s135
          %s137 = sand.u32 %s53, 1
          %s138 = smul.addr %s137, 8
          %s139 = scalar_lea.vmem [#allocation5], %s138
          %s141 = ssub.s32 128, 128
          %142 = vsyncadd %s136, %s141
          %s143 = smul.addr %s17, 128
          %s144 = scalar_lea.hbm %s1, %s143
          %s146 = sshll.u32 %s139, 4
          %s147 = int_to_ptr.vmem [resolvable:$true] %s146
          %149 = dma.hbm_to_vmem [thread:$0]  %s144, 128, %s147, %s136
        $region24: #{tpu_custom_call.1} parent=15 // pred_fallthru
          _
      $region16: #{tpu_custom_call.1} parent=5 // pred_fallthru
        _
      %p150 = scmp.le.s32.totalorder 1, %s17
      %p151 = scmp.lt.s32.totalorder %s17, 3
      %p152 = pnand %p150, %p151
      %p153 = pneg %p152
      // Predicated region
      $region25: #{tpu_custom_call.1} parent=5 // pred_check
        _
      $region26: #{tpu_custom_call.1} parent=5 // pred_check_branch
        %155 = sbr.rel (%p152) target = $region28
      $region27: #{tpu_custom_call.1} parent=5 // pred_region
        %s156 = ssub.s32 %s17, 1
        %s157 = sand.u32 %s30, 1
        %s158 = scalar_lea.sflag [#allocation3], %s157
        %s159 = sand.u32 %s30, 1
        %s160 = smul.addr %s159, 8
        %s161 = scalar_lea.vmem [#allocation2], %s160
        // Predicated region
        $region29: #{tpu_custom_call.1} parent=27 // pred_check
          %p162 = pneg %p43
        $region30: #{tpu_custom_call.1} parent=27 // pred_check_branch
          %164 = sbr.rel (%p162) target = $region32
        $region31: #{tpu_custom_call.1} parent=27 // pred_region
          %165 = dma.done %s158, 128
        $region32: #{tpu_custom_call.1} parent=27 // pred_fallthru
          _
        %s166 = sand.u32 %s56, 1
        %s167 = scalar_lea.sflag [#allocation6], %s166
        %s168 = sand.u32 %s56, 1
        %s169 = smul.addr %s168, 8
        %s170 = scalar_lea.vmem [#allocation5], %s169
        // Predicated region
        $region33: #{tpu_custom_call.1} parent=27 // pred_check
          %p171 = pneg %p69
        $region34: #{tpu_custom_call.1} parent=27 // pred_check_branch
          %173 = sbr.rel (%p171) target = $region36
        $region35: #{tpu_custom_call.1} parent=27 // pred_region
          %174 = dma.done %s167, 128
        $region36: #{tpu_custom_call.1} parent=27 // pred_fallthru
          _
        %s175 = sand.u32 %s30, 1
        %s176 = scalar_lea.sflag [#allocation3], %s175
        %s177 = sand.u32 %s30, 1
        %s178 = smul.addr %s177, 8
        %s179 = scalar_lea.vmem [#allocation2], %s178
        %p180 = pneg %p43
        %p181 = pneg %p40
        %s182 = sand.u32 %s56, 1
        %s183 = scalar_lea.sflag [#allocation6], %s182
        %s184 = sand.u32 %s56, 1
        %s185 = smul.addr %s184, 8
        %s186 = scalar_lea.vmem [#allocation5], %s185
        %p187 = pneg %p69
        %p188 = pneg %p66
        %p189 = pneg %p95
        %p190 = pneg %p92
        %s191 = sand.u32 %s82, 1
        %s192 = scalar_lea.sflag [#allocation4], %s191
        %s193 = sand.u32 %s82, 1
        %s194 = smul.addr %s193, 8
        %s195 = scalar_lea.vmem [#allocation7], %s194
        %v196 = vld [vmem:[%s161] sm:$0xff]
        %v197 = vld [vmem:[%s170] sm:$0xff]
        %v198 = vand.u32 2147483647, %v196
        %v199 = vsub.f32 0.0, %v198
        %v200 = vmul.f32 %v199, 1.442695
        %v201 = vpow.pop %v200
        %v202 = vadd.f32 %v201, 1.0
        %v203 = vlog2.pop %v202
        %v204 = vmul.f32 %v203, 0.6931472
        %v205 = vmul.f32 -0.5, %v201
        %v206 = vadd.f32 %v205, 1.0
        %v207 = vmul.f32 %v206, %v201
        %v208 = vand.u32 2147483647, %v201
        %vm209 = vcmp.lt.f32.partialorder %v208, 0.0004427343
        %v210 = vsel %vm209, %v207, %v204
        %v211 = vsub.f32 0.0, %v196
        %v212 = vmax.f32 %v211, 0.0
        %v213 = vadd.f32 %v210, %v212
        %v214 = vsub.f32 1.0, %v197
        %v215 = vmul.f32 %v214, %v196
        %v216 = vmul.f32 %v197, 3.0
        %v217 = vadd.f32 %v216, 1.0
        %v218 = vmul.f32 %v217, %v213
        %v219 = vadd.f32 %v215, %v218
        %v220 = vsub.f32 0.0, %v219
        %v221 = vmul.f32 %v220, 1.442695
        %v222 = vpow.pop %v221
        %v223 = vsub.f32 1.0, %v222
        %v224 = vmul.f32 %v223, 0.25
        %v225 = vmul.f32 %v224, %v223
        %v226 = vmul.f32 %v225, %v219
        %v227 = vadd.f32 %v226, 0.0
        %228 = vst [vmem:[%s195] sm:$0xff] %v227
        %s229 = sand.u32 %s82, 1
        %s230 = scalar_lea.sflag [#allocation4], %s229
        %s231 = sand.u32 %s82, 1
        %s232 = smul.addr %s231, 8
        %s233 = scalar_lea.vmem [#allocation7], %s232
        // Predicated region
        $region37: #{tpu_custom_call.1} parent=27 // pred_check
          %p234 = pneg %p92
        $region38: #{tpu_custom_call.1} parent=27 // pred_check_branch
          %236 = sbr.rel (%p234) target = $region40
        $region39: #{tpu_custom_call.1} parent=27 // pred_region
          %s238 = ssub.s32 128, 128
          %239 = vsyncadd %s230, %s238
          %s240 = smul.addr %s22, 128
          %s241 = scalar_lea.hbm %s2, %s240
          %s243 = sshll.u32 %s233, 4
          %s244 = int_to_ptr.vmem [resolvable:$true] %s243
          %246 = dma.vmem_to_hbm [thread:$0]  %s244, 128, %s241, %s230
        $region40: #{tpu_custom_call.1} parent=27 // pred_fallthru
          _
      $region28: #{tpu_custom_call.1} parent=5 // pred_fallthru
        _
      %p247 = scmp.le.s32.totalorder 2, %s17
      // Predicated region
      $region41: #{tpu_custom_call.1} parent=5 // pred_check
        %p248 = pneg %p247
      $region42: #{tpu_custom_call.1} parent=5 // pred_check_branch
        %250 = sbr.rel (%p248) target = $region44
      $region43: #{tpu_custom_call.1} parent=5 // pred_region
        %s251 = ssub.s32 %s17, 2
        // Predicated region
        $region45: #{tpu_custom_call.1} parent=43 // pred_check
          %p252 = pneg %p98
        $region46: #{tpu_custom_call.1} parent=43 // pred_check_branch
          %254 = sbr.rel (%p252) target = $region48
        $region47: #{tpu_custom_call.1} parent=43 // pred_region
          %s255 = sand.u32 %s83, 1
          %s256 = scalar_lea.sflag [#allocation4], %s255
          %s257 = sand.u32 %s83, 1
          %s258 = smul.addr %s257, 8
          %s259 = scalar_lea.vmem [#allocation7], %s258
          %260 = dma.done %s256, 128
        $region48: #{tpu_custom_call.1} parent=43 // pred_fallthru
          _
      $region44: #{tpu_custom_call.1} parent=5 // pred_fallthru
        _
    $region6: #{tpu_custom_call.1} parent=1 // loop_footer
      %s21 = sadd.s32 1, %s17
    $region7: #{tpu_custom_call.1} parent=1 // loop_footer_branch
      %16 = sbr.rel target = $region3
    $region8: #{tpu_custom_call.1} parent=1 // loop_exit
      _
    %261 = vsyncpa [#allocation3], 1
    %s262 = scalar_lea.sflag [#allocation3], 1
    %263 = vsyncpa %s262, 1
    %264 = vsyncpa [#allocation6], 1
    %s265 = scalar_lea.sflag [#allocation6], 1
    %266 = vsyncpa %s265, 1
    %267 = vsyncpa [#allocation4], 1
    %s268 = scalar_lea.sflag [#allocation4], 1
    %269 = vsyncpa %s268, 1

</llo_original>
